<compile_context>
chip_gen: v5e
topology: v5e:2x2
jax: 0.10.0
libtpu: 0.0.40
codegen_flags: <defaults>
</compile_context>

<pallas_src>
import functools

import jax
import jax.numpy as jnp
from jax.experimental import pallas as pl
from jax.experimental.pallas import tpu as pltpu

BN_EPS = 1e-5
_MAX_LANE_TILE = 8192          # target lane tile (multiple of 128)
_VMEM_TILE_BUDGET = 24 << 20   # keep blocks well under default scoped VMEM
_VPU_CIN_MAX = 8               # contraction via VPU broadcast-FMA when Cin <= this


def _choose_tile(p, cin, cout):
    """Pick a lane tile for the spatial axis P.

    Preference order: single full-P block (always legal), largest 128-multiple
    divisor of P that fits (no padding, unmasked lane-dense stores), else pad
    to a multiple of the max tile (rare fallback; costs one wrapper slice).
    """
    bytes_per_lane = (cin + cout) * 4 * 2          # f32, in+out, double-buffered
    cap = max(128, (_VMEM_TILE_BUDGET // bytes_per_lane) // 128 * 128)
    max_tile = min(_MAX_LANE_TILE, cap)
    if p <= max_tile:
        return p, p
    for k in range(max_tile // 128, 0, -1):        # trace-time loop only
        t = 128 * k
        if p % t == 0:
            return t, p                            # divides exactly: no padding
    tile = max_tile
    return tile, pl.cdiv(p, tile) * tile


def _make_stats_kernel(cin):
    """Accumulate per-channel sum(x) and the Cin x Cin Gram x x^T over (N, P)."""
    use_vpu = cin <= _VPU_CIN_MAX

    def kernel(x_ref, sum_ref, gram_ref):
        @pl.when((pl.program_id(0) == 0) & (pl.program_id(1) == 0))
        def _():
            sum_ref[...] = jnp.zeros_like(sum_ref)
            gram_ref[...] = jnp.zeros_like(gram_ref)

        xt = x_ref[0]                                         # (Cin, TILE_P) f32
        sum_ref[...] += jnp.sum(xt, axis=1, keepdims=True)    # (Cin, 1)
        if use_vpu:
            # Column-by-column Gram: VPU multiplies + XLU lane reduce, no
            # (Cin, Cin, TILE_P) intermediate.
            for ci in range(cin):
                gram_ref[:, ci:ci + 1] += jnp.sum(
                    xt[ci:ci + 1, :] * xt, axis=1, keepdims=True)
        else:
            gram_ref[...] += jax.lax.dot_general(
                xt, xt, (((1,), (1,)), ((), ())),
                preferred_element_type=jnp.float32)

    return kernel


def _make_conv_kernel(cin):
    """y = W_eff @ x + b_eff over a lane-dense spatial tile."""
    use_vpu = cin <= _VPU_CIN_MAX

    def kernel(x_ref, w_ref, b_ref, o_ref):
        xt = x_ref[0]                                         # (Cin, TILE_P)
        w = w_ref[...]                                        # (Cout, Cin)
        if use_vpu:
            # Cin broadcast-FMAs: (Cout,1)*(1,TILE_P) accumulated on the VPU.
            acc = b_ref[...] + w[:, 0:1] * xt[0:1, :]
            for ci in range(1, cin):
                acc = acc + w[:, ci:ci + 1] * xt[ci:ci + 1, :]
        else:
            acc = jax.lax.dot_general(
                w, xt, (((1,), (0,)), ((), ())),
                preferred_element_type=jnp.float32) + b_ref[...]
        o_ref[0] = acc                                        # (Cout, TILE_P)

    return kernel


@functools.partial(jax.jit, static_argnames=("stride", "use_bn"))
def single_conv_block(x, conv_w, conv_b, bn_gamma, bn_beta, stride, use_bn=True):
    """Forward pass of SingleConvBlock (1x1 conv + bias [+ training-mode BN]).

    x:       (N, Cin, H, W) float32 (NCHW, matching PyTorch)
    conv_w:  (Cout, Cin, 1, 1)
    conv_b, bn_gamma, bn_beta: (Cout,)
    """
    N, Cin, H, W = x.shape
    Cout = conv_w.shape[0]

    if stride != 1:
        # 1x1 conv with stride == spatial subsample.
        # TODO(synk): fold the H/W stride into the BlockSpec index_map to remove
        # this one XLA relayout pass (net HBM traffic is already close to optimal).
        x = x[:, :, ::stride, ::stride]
    Hout, Wout = x.shape[2], x.shape[3]
    P = Hout * Wout
    M = N * P                                 # BN reduction count (N*Hout*Wout)

    x3 = x.reshape(N, Cin, P).astype(jnp.float32)        # free reshape, NCHW-native
    w2 = conv_w.reshape(Cout, Cin).astype(jnp.float32)
    b = conv_b.astype(jnp.float32)

    tile, p_pad = _choose_tile(P, Cin, Cout)
    if p_pad != P:
        x3 = jnp.pad(x3, ((0, 0), (0, 0), (0, p_pad - P)))  # zeros don't bias stats
    n_tp = p_pad // tile
    grid = (N, n_tp)

    if use_bn:
        # Pass 1: sum(x) and Gram(x) -> analytic batch stats of y = Wx + b.
        sum_x, gram = pl.pallas_call(
            _make_stats_kernel(Cin),
            out_shape=(jax.ShapeDtypeStruct((Cin, 1), jnp.float32),
                       jax.ShapeDtypeStruct((Cin, Cin), jnp.float32)),
            grid=grid,
            in_specs=[pl.BlockSpec((1, Cin, tile), lambda n, p: (n, 0, p))],
            out_specs=(pl.BlockSpec((Cin, 1), lambda n, p: (0, 0)),
                       pl.BlockSpec((Cin, Cin), lambda n, p: (0, 0))),
            compiler_params=pltpu.CompilerParams(
                dimension_semantics=("arbitrary", "arbitrary")),
        )(x3)

        hi = jax.lax.Precision.HIGHEST
        inv_m = 1.0 / M
        mean_x = sum_x * inv_m                                   # (Cin, 1)
        cov_x = gram * inv_m - mean_x * jnp.transpose(mean_x)    # (Cin, Cin), biased
        mean_y = jnp.einsum("oc,c->o", w2, mean_x[:, 0], precision=hi) + b
        var_y = jnp.einsum("oc,cd,od->o", w2, cov_x, w2, precision=hi)
        var_y = jnp.maximum(var_y, 0.0)                          # E[x^2]-E[x]^2 guard
        scale = bn_gamma.astype(jnp.float32) * jax.lax.rsqrt(var_y + BN_EPS)
        w_eff = w2 * scale[:, None]
        b_eff = bn_beta.astype(jnp.float32) + (b - mean_y) * scale
    else:
        w_eff, b_eff = w2, b

    # Pass 2: single streaming conv+affine pass, lane-dense output tiles.
    out3 = pl.pallas_call(
        _make_conv_kernel(Cin),
        out_shape=jax.ShapeDtypeStruct((N, Cout, p_pad), jnp.float32),
        grid=grid,
        in_specs=[pl.BlockSpec((1, Cin, tile), lambda n, p: (n, 0, p)),
                  pl.BlockSpec((Cout, Cin), lambda n, p: (0, 0)),
                  pl.BlockSpec((Cout, 1), lambda n, p: (0, 0))],
        out_specs=pl.BlockSpec((1, Cout, tile), lambda n, p: (n, 0, p)),
        compiler_params=pltpu.CompilerParams(
            dimension_semantics=("parallel", "parallel")),
    )(x3, w_eff, b_eff.reshape(Cout, 1))

    if p_pad != P:
        out3 = out3[:, :, :P]
    return out3.reshape(N, Cout, Hout, Wout)   # free reshape back to NCHW


def _reference(x, conv_w, conv_b, bn_gamma, bn_beta, stride, use_bn=True):
    """Pure-JAX reference matching PyTorch semantics (training-mode BN)."""
    xs = x[:, :, ::stride, ::stride]
    y = jnp.einsum("nchw,oc->nohw", xs, conv_w.reshape(conv_w.shape[0], -1),
                   precision=jax.lax.Precision.HIGHEST)
    y = y + conv_b[None, :, None, None]
    if use_bn:
        mean = jnp.mean(y, axis=(0, 2, 3), keepdims=True)
        var = jnp.mean((y - mean) ** 2, axis=(0, 2, 3), keepdims=True)
        y = (y - mean) / jnp.sqrt(var + BN_EPS)
        y = y * bn_gamma[None, :, None, None] + bn_beta[None, :, None, None]
    return y


if __name__ == "__main__":
    key = jax.random.PRNGKey(0)
    k_x, k_w, k_b, k_g, k_be = jax.random.split(key, 5)

    # Small shapes consistent with the module: NCHW input, 1x1 conv stride 2.
    N, Cin, H, W = 2, 4, 16, 16
    Cout, stride = 8, 2

    x = jax.random.normal(k_x, (N, Cin, H, W), dtype=jnp.float32)
    conv_w = jax.random.normal(k_w, (Cout, Cin, 1, 1), dtype=jnp.float32) * 0.1
    conv_b = jax.random.normal(k_b, (Cout,), dtype=jnp.float32) * 0.1
    bn_gamma = 1.0 + 0.1 * jax.random.normal(k_g, (Cout,), dtype=jnp.float32)
    bn_beta = 0.1 * jax.random.normal(k_be, (Cout,), dtype=jnp.float32)

    # BN path
    out = single_conv_block(x, conv_w, conv_b, bn_gamma, bn_beta,
                            stride=stride, use_bn=True)
    out = jax.block_until_ready(out)
    ref = _reference(x, conv_w, conv_b, bn_gamma, bn_beta, stride, use_bn=True)
    assert out.shape == (N, Cout, H // stride, W // stride), out.shape
    assert jnp.allclose(out, ref, atol=2e-4, rtol=2e-4), float(
        jnp.max(jnp.abs(out - ref)))

    # Conv-only path
    out_nb = single_conv_block(x, conv_w, conv_b, bn_gamma, bn_beta,
                               stride=stride, use_bn=False)
    out_nb = jax.block_until_ready(out_nb)
    ref_nb = _reference(x, conv_w, conv_b, bn_gamma, bn_beta, stride, use_bn=False)
    assert jnp.allclose(out_nb, ref_nb, atol=2e-4, rtol=2e-4), float(
        jnp.max(jnp.abs(out_nb - ref_nb)))

    print("KERNEL_OK")
</pallas_src>

<mosaic_0001>
module attributes {stable_mosaic.version = 11 : i64} {
  func.func @kernel(%arg0: i32, %arg1: i32, %arg2: memref<1x4x64xf32, #tpu.memory_space<vmem>>, %arg3: memref<4x1xf32, #tpu.memory_space<vmem>>, %arg4: memref<4x4xf32, #tpu.memory_space<vmem>>) attributes {dimension_semantics = [#tpu.dimension_semantics<arbitrary>, #tpu.dimension_semantics<arbitrary>], iteration_bounds = array<i64: 2, 1>, scalar_prefetch = 0 : i64, scratch_operands = 0 : i64, tpu.core_type = #tpu.core_type<tc>, window_params = [{transform_indices = @transform_0, window_bounds = array<i64: 1, 4, 64>}, {pipeline_mode = #tpu.pipeline_mode<synchronous>, transform_indices = @transform_1, window_bounds = array<i64: 4, 1>}, {pipeline_mode = #tpu.pipeline_mode<synchronous>, transform_indices = @transform_2, window_bounds = array<i64: 4, 4>}]} {
    %c0_i32 = arith.constant 0 : i32
    %0 = arith.cmpi eq, %arg0, %c0_i32 : i32
    %c0_i32_0 = arith.constant 0 : i32
    %1 = arith.cmpi eq, %arg1, %c0_i32_0 : i32
    %2 = arith.andi %0, %1 : i1
    %3 = arith.extui %2 : i1 to i32
    %c0_i32_1 = arith.constant 0 : i32
    %4 = arith.cmpi ne, %3, %c0_i32_1 : i32
    scf.if %4 {
      %cst_25 = arith.constant 0.000000e+00 : f32
      %44 = vector.broadcast %cst_25 : f32 to vector<4x1xf32>
      %c0_26 = arith.constant 0 : index
      %c0_27 = arith.constant 0 : index
      %45 = vector.load %arg3[%c0_26, %c0_27] : memref<4x1xf32, #tpu.memory_space<vmem>>, vector<4x1xf32>
      tpu.vector_store %arg3[%c0_26, %c0_27], %44 {strides = array<i32>} : memref<4x1xf32, #tpu.memory_space<vmem>>, vector<4x1xf32>,
      %cst_28 = arith.constant 0.000000e+00 : f32
      %46 = vector.broadcast %cst_28 : f32 to vector<4x4xf32>
      %c0_29 = arith.constant 0 : index
      %c0_30 = arith.constant 0 : index
      %47 = vector.load %arg4[%c0_29, %c0_30] : memref<4x4xf32, #tpu.memory_space<vmem>>, vector<4x4xf32>
      tpu.vector_store %arg4[%c0_29, %c0_30], %46 {strides = array<i32>} : memref<4x4xf32, #tpu.memory_space<vmem>>, vector<4x4xf32>,
    } else {
    }
    %c0 = arith.constant 0 : index
    %c0_2 = arith.constant 0 : index
    %c0_3 = arith.constant 0 : index
    %5 = vector.load %arg2[%c0, %c0_2, %c0_3] : memref<1x4x64xf32, #tpu.memory_space<vmem>>, vector<1x4x64xf32>
    %6 = vector.shape_cast %5 : vector<1x4x64xf32> to vector<4x64xf32>
    %c0_4 = arith.constant 0 : index
    %c0_5 = arith.constant 0 : index
    %7 = vector.load %arg3[%c0_4, %c0_5] : memref<4x1xf32, #tpu.memory_space<vmem>>, vector<4x1xf32>
    %cst = arith.constant dense<0.000000e+00> : vector<4xf32>
    %8 = vector.multi_reduction <add>, %6, %cst [1] : vector<4x64xf32> to vector<4xf32>
    %9 = vector.shape_cast %8 : vector<4xf32> to vector<4x1xf32>
    %10 = arith.addf %7, %9 : vector<4x1xf32>
    %c0_6 = arith.constant 0 : index
    %c0_7 = arith.constant 0 : index
    %11 = vector.load %arg3[%c0_6, %c0_7] : memref<4x1xf32, #tpu.memory_space<vmem>>, vector<4x1xf32>
    tpu.vector_store %arg3[%c0_6, %c0_7], %10 {strides = array<i32>} : memref<4x1xf32, #tpu.memory_space<vmem>>, vector<4x1xf32>,
    %c0_8 = arith.constant 0 : index
    %c0_9 = arith.constant 0 : index
    %12 = vector.load %arg4[%c0_8, %c0_9] : memref<4x4xf32, #tpu.memory_space<vmem>>, vector<4x1xf32>
    %13 = vector.extract_strided_slice %6 {offsets = [0, 0], sizes = [1, 64], strides = [1, 1]} : vector<4x64xf32> to vector<1x64xf32>
    %14 = vector.broadcast %13 : vector<1x64xf32> to vector<4x64xf32>
    %15 = arith.mulf %14, %6 : vector<4x64xf32>
    %cst_10 = arith.constant dense<0.000000e+00> : vector<4xf32>
    %16 = vector.multi_reduction <add>, %15, %cst_10 [1] : vector<4x64xf32> to vector<4xf32>
    %17 = vector.shape_cast %16 : vector<4xf32> to vector<4x1xf32>
    %18 = arith.addf %12, %17 : vector<4x1xf32>
    %c0_11 = arith.constant 0 : index
    %c0_12 = arith.constant 0 : index
    %19 = vector.load %arg4[%c0_11, %c0_12] : memref<4x4xf32, #tpu.memory_space<vmem>>, vector<4x1xf32>
    tpu.vector_store %arg4[%c0_11, %c0_12], %18 {strides = array<i32>} : memref<4x4xf32, #tpu.memory_space<vmem>>, vector<4x1xf32>,
    %c0_13 = arith.constant 0 : index
    %c1 = arith.constant 1 : index
    %20 = vector.load %arg4[%c0_13, %c1] : memref<4x4xf32, #tpu.memory_space<vmem>>, vector<4x1xf32>
    %21 = vector.extract_strided_slice %6 {offsets = [1, 0], sizes = [1, 64], strides = [1, 1]} : vector<4x64xf32> to vector<1x64xf32>
    %22 = vector.broadcast %21 : vector<1x64xf32> to vector<4x64xf32>
    %23 = arith.mulf %22, %6 : vector<4x64xf32>
    %cst_14 = arith.constant dense<0.000000e+00> : vector<4xf32>
    %24 = vector.multi_reduction <add>, %23, %cst_14 [1] : vector<4x64xf32> to vector<4xf32>
    %25 = vector.shape_cast %24 : vector<4xf32> to vector<4x1xf32>
    %26 = arith.addf %20, %25 : vector<4x1xf32>
    %c0_15 = arith.constant 0 : index
    %c1_16 = arith.constant 1 : index
    %27 = vector.load %arg4[%c0_15, %c1_16] : memref<4x4xf32, #tpu.memory_space<vmem>>, vector<4x1xf32>
    tpu.vector_store %arg4[%c0_15, %c1_16], %26 {strides = array<i32>} : memref<4x4xf32, #tpu.memory_space<vmem>>, vector<4x1xf32>,
    %c0_17 = arith.constant 0 : index
    %c2 = arith.constant 2 : index
    %28 = vector.load %arg4[%c0_17, %c2] : memref<4x4xf32, #tpu.memory_space<vmem>>, vector<4x1xf32>
    %29 = vector.extract_strided_slice %6 {offsets = [2, 0], sizes = [1, 64], strides = [1, 1]} : vector<4x64xf32> to vector<1x64xf32>
    %30 = vector.broadcast %29 : vector<1x64xf32> to vector<4x64xf32>
    %31 = arith.mulf %30, %6 : vector<4x64xf32>
    %cst_18 = arith.constant dense<0.000000e+00> : vector<4xf32>
    %32 = vector.multi_reduction <add>, %31, %cst_18 [1] : vector<4x64xf32> to vector<4xf32>
    %33 = vector.shape_cast %32 : vector<4xf32> to vector<4x1xf32>
    %34 = arith.addf %28, %33 : vector<4x1xf32>
    %c0_19 = arith.constant 0 : index
    %c2_20 = arith.constant 2 : index
    %35 = vector.load %arg4[%c0_19, %c2_20] : memref<4x4xf32, #tpu.memory_space<vmem>>, vector<4x1xf32>
    tpu.vector_store %arg4[%c0_19, %c2_20], %34 {strides = array<i32>} : memref<4x4xf32, #tpu.memory_space<vmem>>, vector<4x1xf32>,
    %c0_21 = arith.constant 0 : index
    %c3 = arith.constant 3 : index
    %36 = vector.load %arg4[%c0_21, %c3] : memref<4x4xf32, #tpu.memory_space<vmem>>, vector<4x1xf32>
    %37 = vector.extract_strided_slice %6 {offsets = [3, 0], sizes = [1, 64], strides = [1, 1]} : vector<4x64xf32> to vector<1x64xf32>
    %38 = vector.broadcast %37 : vector<1x64xf32> to vector<4x64xf32>
    %39 = arith.mulf %38, %6 : vector<4x64xf32>
    %cst_22 = arith.constant dense<0.000000e+00> : vector<4xf32>
    %40 = vector.multi_reduction <add>, %39, %cst_22 [1] : vector<4x64xf32> to vector<4xf32>
    %41 = vector.shape_cast %40 : vector<4xf32> to vector<4x1xf32>
    %42 = arith.addf %36, %41 : vector<4x1xf32>
    %c0_23 = arith.constant 0 : index
    %c3_24 = arith.constant 3 : index
    %43 = vector.load %arg4[%c0_23, %c3_24] : memref<4x4xf32, #tpu.memory_space<vmem>>, vector<4x1xf32>
    tpu.vector_store %arg4[%c0_23, %c3_24], %42 {strides = array<i32>} : memref<4x4xf32, #tpu.memory_space<vmem>>, vector<4x1xf32>,
    return
  }
  func.func @transform_0(%arg0: i32, %arg1: i32) -> (i32, i32, i32) {
    %c0_i32 = arith.constant 0 : i32
    %c0_i32_0 = arith.constant 0 : i32
    return %arg0, %c0_i32, %arg1 : i32, i32, i32
  }
  func.func @transform_1(%arg0: i32, %arg1: i32) -> (i32, i32) {
    %c0_i32 = arith.constant 0 : i32
    %c0_i32_0 = arith.constant 0 : i32
    %c0_i32_1 = arith.constant 0 : i32
    return %c0_i32, %c0_i32_0 : i32, i32
  }
  func.func @transform_2(%arg0: i32, %arg1: i32) -> (i32, i32) {
    %c0_i32 = arith.constant 0 : i32
    %c0_i32_0 = arith.constant 0 : i32
    %c0_i32_1 = arith.constant 0 : i32
    return %c0_i32, %c0_i32_0 : i32, i32
  }
}

module attributes {stable_mosaic.version = 11 : i64} {
  func.func @kernel(%arg0: i32, %arg1: i32, %arg2: memref<1x4x64xf32, #tpu.memory_space<vmem>>, %arg3: memref<8x4xf32, #tpu.memory_space<vmem>>, %arg4: memref<8x1xf32, #tpu.memory_space<vmem>>, %arg5: memref<1x8x64xf32, #tpu.memory_space<vmem>>) attributes {dimension_semantics = [#tpu.dimension_semantics<parallel>, #tpu.dimension_semantics<parallel>], iteration_bounds = array<i64: 2, 1>, scalar_prefetch = 0 : i64, scratch_operands = 0 : i64, tpu.core_type = #tpu.core_type<tc>, window_params = [{transform_indices = @transform_0, window_bounds = array<i64: 1, 4, 64>}, {pipeline_mode = #tpu.pipeline_mode<synchronous>, transform_indices = @transform_1, window_bounds = array<i64: 8, 4>}, {pipeline_mode = #tpu.pipeline_mode<synchronous>, transform_indices = @transform_2, window_bounds = array<i64: 8, 1>}, {transform_indices = @transform_3, window_bounds = array<i64: 1, 8, 64>}]} {
    %c0 = arith.constant 0 : index
    %c0_0 = arith.constant 0 : index
    %c0_1 = arith.constant 0 : index
    %0 = vector.load %arg2[%c0, %c0_0, %c0_1] : memref<1x4x64xf32, #tpu.memory_space<vmem>>, vector<1x4x64xf32>
    %1 = vector.shape_cast %0 : vector<1x4x64xf32> to vector<4x64xf32>
    %c0_2 = arith.constant 0 : index
    %c0_3 = arith.constant 0 : index
    %2 = vector.load %arg3[%c0_2, %c0_3] : memref<8x4xf32, #tpu.memory_space<vmem>>, vector<8x4xf32>
    %c0_4 = arith.constant 0 : index
    %c0_5 = arith.constant 0 : index
    %3 = vector.load %arg4[%c0_4, %c0_5] : memref<8x1xf32, #tpu.memory_space<vmem>>, vector<8x1xf32>
    %4 = vector.extract_strided_slice %2 {offsets = [0, 0], sizes = [8, 1], strides = [1, 1]} : vector<8x4xf32> to vector<8x1xf32>
    %5 = vector.extract_strided_slice %1 {offsets = [0, 0], sizes = [1, 64], strides = [1, 1]} : vector<4x64xf32> to vector<1x64xf32>
    %6 = vector.broadcast %4 : vector<8x1xf32> to vector<8x64xf32>
    %7 = vector.broadcast %5 : vector<1x64xf32> to vector<8x64xf32>
    %8 = arith.mulf %6, %7 : vector<8x64xf32>
    %9 = vector.broadcast %3 : vector<8x1xf32> to vector<8x64xf32>
    %10 = arith.addf %9, %8 : vector<8x64xf32>
    %11 = vector.extract_strided_slice %2 {offsets = [0, 1], sizes = [8, 1], strides = [1, 1]} : vector<8x4xf32> to vector<8x1xf32>
    %12 = vector.extract_strided_slice %1 {offsets = [1, 0], sizes = [1, 64], strides = [1, 1]} : vector<4x64xf32> to vector<1x64xf32>
    %13 = vector.broadcast %11 : vector<8x1xf32> to vector<8x64xf32>
    %14 = vector.broadcast %12 : vector<1x64xf32> to vector<8x64xf32>
    %15 = arith.mulf %13, %14 : vector<8x64xf32>
    %16 = arith.addf %10, %15 : vector<8x64xf32>
    %17 = vector.extract_strided_slice %2 {offsets = [0, 2], sizes = [8, 1], strides = [1, 1]} : vector<8x4xf32> to vector<8x1xf32>
    %18 = vector.extract_strided_slice %1 {offsets = [2, 0], sizes = [1, 64], strides = [1, 1]} : vector<4x64xf32> to vector<1x64xf32>
    %19 = vector.broadcast %17 : vector<8x1xf32> to vector<8x64xf32>
    %20 = vector.broadcast %18 : vector<1x64xf32> to vector<8x64xf32>
    %21 = arith.mulf %19, %20 : vector<8x64xf32>
    %22 = arith.addf %16, %21 : vector<8x64xf32>
    %23 = vector.extract_strided_slice %2 {offsets = [0, 3], sizes = [8, 1], strides = [1, 1]} : vector<8x4xf32> to vector<8x1xf32>
    %24 = vector.extract_strided_slice %1 {offsets = [3, 0], sizes = [1, 64], strides = [1, 1]} : vector<4x64xf32> to vector<1x64xf32>
    %25 = vector.broadcast %23 : vector<8x1xf32> to vector<8x64xf32>
    %26 = vector.broadcast %24 : vector<1x64xf32> to vector<8x64xf32>
    %27 = arith.mulf %25, %26 : vector<8x64xf32>
    %28 = arith.addf %22, %27 : vector<8x64xf32>
    %c0_6 = arith.constant 0 : index
    %c0_7 = arith.constant 0 : index
    %c0_8 = arith.constant 0 : index
    %29 = vector.load %arg5[%c0_6, %c0_7, %c0_8] : memref<1x8x64xf32, #tpu.memory_space<vmem>>, vector<1x8x64xf32>
    %30 = vector.shape_cast %29 : vector<1x8x64xf32> to vector<8x64xf32>
    %31 = vector.shape_cast %28 : vector<8x64xf32> to vector<1x8x64xf32>
    tpu.vector_store %arg5[%c0_6, %c0_7, %c0_8], %31 {strides = array<i32>} : memref<1x8x64xf32, #tpu.memory_space<vmem>>, vector<1x8x64xf32>,
    return
  }
  func.func @transform_0(%arg0: i32, %arg1: i32) -> (i32, i32, i32) {
    %c0_i32 = arith.constant 0 : i32
    %c0_i32_0 = arith.constant 0 : i32
    return %arg0, %c0_i32, %arg1 : i32, i32, i32
  }
  func.func @transform_1(%arg0: i32, %arg1: i32) -> (i32, i32) {
    %c0_i32 = arith.constant 0 : i32
    %c0_i32_0 = arith.constant 0 : i32
    %c0_i32_1 = arith.constant 0 : i32
    return %c0_i32, %c0_i32_0 : i32, i32
  }
  func.func @transform_2(%arg0: i32, %arg1: i32) -> (i32, i32) {
    %c0_i32 = arith.constant 0 : i32
    %c0_i32_0 = arith.constant 0 : i32
    %c0_i32_1 = arith.constant 0 : i32
    return %c0_i32, %c0_i32_0 : i32, i32
  }
  func.func @transform_3(%arg0: i32, %arg1: i32) -> (i32, i32, i32) {
    %c0_i32 = arith.constant 0 : i32
    %c0_i32_0 = arith.constant 0 : i32
    return %arg0, %c0_i32, %arg1 : i32, i32, i32
  }
}

</mosaic_0001>

<llo_original>
// kernel: single_conv_block.2
$region0: #{single_conv_block.2}
  #allocation0 [shape = 'u32[]', space=smem, size = 0x4, offset = 0x4, fixed_abs, tag = 'smem constant byte address 0x4 - core index']
  #allocation1 [shape = 'u32[72,128]{1,0:T(1,128)}', space=vmem, size = 0x9000, scoped, tag = 'internal scratch']
  %s0 = inlined_call_operand.vmem [shape: f32[2,4,64], index: 0, kind: input, shape index: {}]
  %s1 = inlined_call_operand.vmem [shape: f32[4,1], index: 1, kind: output, shape index: {0}]
  %s2 = inlined_call_operand.vmem [shape: f32[4,4], index: 2, kind: output, shape index: {1}]
  %3 = xla_tuple %s1, %s2
  %s4 = sld [smem:[#allocation0]]
  $region49: #{single_conv_block.2} parent=0
    _
  %s6 = ssub.s32 1, %s4
  %s7 = scalar_select 0, %s6, %s4
  loop: start=0, step=1, limit=4
  $region2: #{single_conv_block.2} parent=0 // loop_pre_header
    _
  $region3: #{single_conv_block.2} parent=0 // loop_header
    %s9 = sphi 0, %s13
    %p10 = scmp.ge.s32.totalorder %s9, 4
    %s16 = sphi 0, %s28
    %s17 = sphi 0, %s24
    %s18 = sphi 0, %s16
    %s19 = sphi 0, %s17
    %s20 = sphi 0, %s18
    %s21 = sphi 0, %s19
    %s33 = sphi 0, %s35
    %s36 = sphi 0, %s33
    %s37 = sphi 0, %s36
    %s53 = sphi 0, %s37
    %s57 = sphi 0, %s57
    %s59 = sphi 0, %s57
    %s60 = sphi 0, %s59
    %s74 = sphi 0, %s60
    %s78 = sphi 0, %s78
    %s80 = sphi 0, %s78
    %s81 = sphi 0, %s80
    %s95 = sphi 0, %s81
  $region4: #{single_conv_block.2} parent=0 // loop_header_branch
    %12 = sbr.rel (%p10) target = $region8
  $region5: #{single_conv_block.2} parent=0 // loop_body
    %s14 = ssub.s32 %s9, 1
    %s15 = ssub.s32 %s9, 2
    %s22 = sadd.s32 1, %s17
    %p23 = scmp.ge.s32.totalorder %s22, 1
    %s24 = scalar_select %p23, 0, %s22
    %s25 = sadd.s32 1, %s16
    %s26 = scalar_select %p23, %s25, %s16
    %p27 = scmp.ge.s32.totalorder %s26, 2
    %s28 = scalar_select %p27, 0, %s26
    %s29 = ssub.s32 %s16, %s28
    %s30 = ssub.s32 %s17, %s24
    %s31 = sor.u32 %s29, %s30
    %p32 = scmp.eq.s32.totalorder %s31, 0
    %s34 = sadd.s32 %s33, 1
    %s35 = scalar_select %p32, %s33, %s34
    %p38 = pneg %p32
    %p39 = scmp.eq.s32.totalorder %s9, 1
    %p40 = por %p38, %p39
    %p41 = scmp.ne.s32.totalorder %s33, %s36
    %p42 = scmp.eq.s32.totalorder %s9, 0
    %p43 = por %p41, %p42
    %p44 = scmp.ne.s32.totalorder %s33, %s36
    %p45 = scmp.eq.s32.totalorder %s14, 1
    %p46 = por %p44, %p45
    %p47 = scmp.ne.s32.totalorder %s36, %s37
    %p48 = scmp.eq.s32.totalorder %s14, 0
    %p49 = por %p47, %p48
    %p50 = scmp.ne.s32.totalorder %s36, %s37
    %p51 = scmp.eq.s32.totalorder %s15, 1
    %p52 = por %p50, %p51
    %p54 = scmp.ne.s32.totalorder %s37, %s53
    %p55 = scmp.eq.s32.totalorder %s15, 0
    %p56 = por %p54, %p55
    %s58 = sadd.s32 %s57, 1
    %p61 = scmp.eq.s32.totalorder %s9, 1
    %p62 = scmp.ne.s32.totalorder %s57, %s59
    %p63 = scmp.eq.s32.totalorder %s9, 0
    %p64 = por %p62, %p63
    %p65 = scmp.ne.s32.totalorder %s57, %s59
    %p66 = scmp.eq.s32.totalorder %s14, 1
    %p67 = por %p65, %p66
    %p68 = scmp.ne.s32.totalorder %s59, %s60
    %p69 = scmp.eq.s32.totalorder %s14, 0
    %p70 = por %p68, %p69
    %p71 = scmp.ne.s32.totalorder %s59, %s60
    %p72 = scmp.eq.s32.totalorder %s15, 1
    %p73 = por %p71, %p72
    %p75 = scmp.ne.s32.totalorder %s60, %s74
    %p76 = scmp.eq.s32.totalorder %s15, 0
    %p77 = por %p75, %p76
    %s79 = sadd.s32 %s78, 1
    %p82 = scmp.eq.s32.totalorder %s9, 1
    %p83 = scmp.ne.s32.totalorder %s78, %s80
    %p84 = scmp.eq.s32.totalorder %s9, 0
    %p85 = por %p83, %p84
    %p86 = scmp.ne.s32.totalorder %s78, %s80
    %p87 = scmp.eq.s32.totalorder %s14, 1
    %p88 = por %p86, %p87
    %p89 = scmp.ne.s32.totalorder %s80, %s81
    %p90 = scmp.eq.s32.totalorder %s14, 0
    %p91 = por %p89, %p90
    %p92 = scmp.ne.s32.totalorder %s80, %s81
    %p93 = scmp.eq.s32.totalorder %s15, 1
    %p94 = por %p92, %p93
    %p96 = scmp.ne.s32.totalorder %s81, %s95
    %p97 = scmp.eq.s32.totalorder %s15, 0
    %p98 = por %p96, %p97
    %p99 = scmp.le.s32.totalorder 1, %s9
    %p100 = scmp.lt.s32.totalorder %s9, 3
    %p101 = pnand %p99, %p100
    %p102 = pneg %p101
    // Predicated region
    $region9: #{single_conv_block.2} parent=5 // pred_check
      _
    $region10: #{single_conv_block.2} parent=5 // pred_check_branch
      %104 = sbr.rel (%p101) target = $region12
    $region11: #{single_conv_block.2} parent=5 // pred_region
      %s105 = ssub.s32 %s9, 1
    $region12: #{single_conv_block.2} parent=5 // pred_fallthru
      _
    %p106 = scmp.lt.s32.totalorder %s9, 2
    // Predicated region
    $region13: #{single_conv_block.2} parent=5 // pred_check
      %p107 = pneg %p106
    $region14: #{single_conv_block.2} parent=5 // pred_check_branch
      %109 = sbr.rel (%p107) target = $region16
    $region15: #{single_conv_block.2} parent=5 // pred_region
      // Predicated region
      $region17: #{single_conv_block.2} parent=15 // pred_check
        %p110 = pneg %p43
      $region18: #{single_conv_block.2} parent=15 // pred_check_branch
        %112 = sbr.rel (%p110) target = $region20
      $region19: #{single_conv_block.2} parent=15 // pred_region
        %p113 = scmp.lt.s32.totalorder %s16, 1
        %s114 = scalar_select %p113, %s16, 1
        %p115 = scmp.lt.s32.totalorder %s17, 0
        %s116 = scalar_select %p115, %s17, 0
        %s117 = sadd.s32 %s116, %s114
        %s118 = smul.addr %s117, 4
        %s119 = scalar_lea.vmem %s0, %s118
      $region20: #{single_conv_block.2} parent=15 // pred_fallthru
        _
    $region16: #{single_conv_block.2} parent=5 // pred_fallthru
      _
    %p120 = scmp.le.s32.totalorder 1, %s9
    %p121 = scmp.lt.s32.totalorder %s9, 3
    %p122 = pnand %p120, %p121
    %p123 = pneg %p122
    // Predicated region
    $region21: #{single_conv_block.2} parent=5 // pred_check
      _
    $region22: #{single_conv_block.2} parent=5 // pred_check_branch
      %125 = sbr.rel (%p122) target = $region24
    $region23: #{single_conv_block.2} parent=5 // pred_region
      %s126 = ssub.s32 %s9, 1
      %p127 = scmp.lt.s32.totalorder %s18, 1
      %s128 = scalar_select %p127, %s18, 1
      %p129 = scmp.lt.s32.totalorder %s19, 0
      %s130 = scalar_select %p129, %s19, 0
      %s131 = sadd.s32 %s130, %s128
      %s132 = smul.addr %s131, 4
      %s133 = scalar_lea.vmem %s0, %s132
      %p134 = pneg %p49
      %p135 = pneg %p46
      %p136 = pneg %p70
      %p137 = pneg %p67
      %p138 = pneg %p91
      %p139 = pneg %p88
      %p140 = scmp.lt.s32.totalorder %s18, 1
      %s141 = scalar_select %p140, %s18, 1
      %p142 = scmp.lt.s32.totalorder %s19, 0
      %s143 = scalar_select %p142, %s19, 0
      %s144 = sadd.s32 %s143, %s141
      %s145 = smul.addr %s144, 4
      %s146 = scalar_lea.vmem %s0, %s145
      %p147 = scmp.eq.s32.totalorder %s18, 0
      %p148 = scmp.eq.s32.totalorder %s19, 0
      %p149 = pnand %p147, %p148
      %p150 = pneg %p149
      // Predicated region
      $region25: #{single_conv_block.2} parent=23 // pred_check
        _
      $region26: #{single_conv_block.2} parent=23 // pred_check_branch
        %152 = sbr.rel (%p149) target = $region28
      $region27: #{single_conv_block.2} parent=23 // pred_region
        %vm153 = vcmask 3072
        %154 = vst.msk [vmem:[%s1] sm:$0xf] %vm153, 0.0
        %vm155 = vcmask 27648
        %156 = vst.msk [vmem:[%s2] sm:$0xf] %vm155, 0.0
      $region28: #{single_conv_block.2} parent=23 // pred_fallthru
        _
      %v157 = vld [vmem:[%s146] sm:$0xf]
      %v158 = vld [vmem:[%s1] sm:$0xf]
      %vm159 = vcmask 519168
      %v160 = vsel %vm159, %v157, 0.0
      %161 = vadd.xlane.f32.xlu0 %v160
      %v162 = vpop.xlane.xlu0 %161
      %v163 = vadd.f32 %v158, %v162
      %vm164 = vcmask 3072
      %165 = vst.msk [vmem:[%s1] sm:$0xf] %vm164, %v163
      %v166 = vld [vmem:[%s2] sm:$0xf]
      %v167 = vperm.slane %v157, 0
      %v168 = vmul.f32 %v167, %v157
      %v169 = vsel %vm159, %v168, 0.0
      %170 = vadd.xlane.f32.xlu0 %v169
      %v171 = vpop.xlane.xlu0 %170
      %v172 = vadd.f32 %v166, %v171
      %173 = vst.msk [vmem:[%s2] sm:$0xf] %vm164, %v172
      %v174 = vld [vmem:[%s2] sm:$0xf]
      %v175 = vperm.slane %v157, 1
      %v176 = vmul.f32 %v175, %v157
      %v177 = vsel %vm159, %v176, 0.0
      %178 = vadd.xlane.f32.xlu0 %v177
      %v179 = vpop.xlane.xlu0 %178
      %v180 = vadd.f32 %v174, %v179
      %vm181 = vcmask 11272
      %182 = vst.msk [vmem:[%s2] sm:$0xf] %vm181, %v180
      %v183 = vld [vmem:[%s2] sm:$0xf]
      %v184 = vperm.slane %v157, 2
      %v185 = vmul.f32 %v184, %v157
      %v186 = vsel %vm159, %v185, 0.0
      %187 = vadd.xlane.f32.xlu0 %v186
      %v188 = vpop.xlane.xlu0 %187
      %v189 = vadd.f32 %v183, %v188
      %vm190 = vcmask 19472
      %191 = vst.msk [vmem:[%s2] sm:$0xf] %vm190, %v189
      %v192 = vld [vmem:[%s2] sm:$0xf]
      %v193 = vperm.slane %v157, 3
      %v194 = vmul.f32 %v193, %v157
      %v195 = vsel %vm159, %v194, 0.0
      %196 = vadd.xlane.f32.xlu0 %v195
      %v197 = vpop.xlane.xlu0 %196
      %v198 = vadd.f32 %v192, %v197
      %vm199 = vcmask 27672
      %200 = vst.msk [vmem:[%s2] sm:$0xf] %vm199, %v198
      // Predicated region
      $region29: #{single_conv_block.2} parent=23 // pred_check
        %p201 = pneg %p67
      $region30: #{single_conv_block.2} parent=23 // pred_check_branch
        %203 = sbr.rel (%p201) target = $region32
      $region31: #{single_conv_block.2} parent=23 // pred_region
        _
      $region32: #{single_conv_block.2} parent=23 // pred_fallthru
        _
      // Predicated region
      $region33: #{single_conv_block.2} parent=23 // pred_check
        %p204 = pneg %p88
      $region34: #{single_conv_block.2} parent=23 // pred_check_branch
        %206 = sbr.rel (%p204) target = $region36
      $region35: #{single_conv_block.2} parent=23 // pred_region
        _
      $region36: #{single_conv_block.2} parent=23 // pred_fallthru
        _
      // Predicated region
      $region37: #{single_conv_block.2} parent=23 // pred_check
        %p207 = pneg %p67
      $region38: #{single_conv_block.2} parent=23 // pred_check_branch
        %209 = sbr.rel (%p207) target = $region40
      $region39: #{single_conv_block.2} parent=23 // pred_region
        _
      $region40: #{single_conv_block.2} parent=23 // pred_fallthru
        _
      // Predicated region
      $region41: #{single_conv_block.2} parent=23 // pred_check
        %p210 = pneg %p88
      $region42: #{single_conv_block.2} parent=23 // pred_check_branch
        %212 = sbr.rel (%p210) target = $region44
      $region43: #{single_conv_block.2} parent=23 // pred_region
        _
      $region44: #{single_conv_block.2} parent=23 // pred_fallthru
        _
    $region24: #{single_conv_block.2} parent=5 // pred_fallthru
      _
    %p213 = scmp.le.s32.totalorder 2, %s9
    // Predicated region
    $region45: #{single_conv_block.2} parent=5 // pred_check
      %p214 = pneg %p213
    $region46: #{single_conv_block.2} parent=5 // pred_check_branch
      %216 = sbr.rel (%p214) target = $region48
    $region47: #{single_conv_block.2} parent=5 // pred_region
      %s217 = ssub.s32 %s9, 2
    $region48: #{single_conv_block.2} parent=5 // pred_fallthru
      _
  $region6: #{single_conv_block.2} parent=0 // loop_footer
    %s13 = sadd.s32 1, %s9
  $region7: #{single_conv_block.2} parent=0 // loop_footer_branch
    %8 = sbr.rel target = $region3
  $region8: #{single_conv_block.2} parent=0 // loop_exit
    _

// kernel: single_conv_block.3
$region0: #{single_conv_block.3}
  #allocation0 [shape = 'u32[]', space=smem, size = 0x4, offset = 0x4, fixed_abs, tag = 'smem constant byte address 0x4 - core index']
  #allocation1 [shape = 'u32[72,128]{1,0:T(1,128)}', space=vmem, size = 0x9000, scoped, tag = 'internal scratch']
  %s0 = inlined_call_operand.vmem [shape: f32[2,4,64], index: 0, kind: input, shape index: {}]
  %s1 = inlined_call_operand.vmem [shape: f32[8,4], index: 1, kind: input, shape index: {}]
  %s2 = inlined_call_operand.vmem [shape: f32[8,1], index: 2, kind: input, shape index: {}]
  %s3 = inlined_call_operand.vmem [shape: f32[2,8,64], index: 3, kind: output, shape index: {}]
  %s4 = sld [smem:[#allocation0]]
  $region45: #{single_conv_block.3} parent=0
    _
  %s6 = ssub.s32 1, %s4
  %s7 = scalar_select 0, %s6, %s4
  loop: start=0, step=1, limit=4
  $region2: #{single_conv_block.3} parent=0 // loop_pre_header
    _
  $region3: #{single_conv_block.3} parent=0 // loop_header
    %s9 = sphi 0, %s13
    %p10 = scmp.ge.s32.totalorder %s9, 4
    %s16 = sphi 0, %s28
    %s17 = sphi 0, %s24
    %s18 = sphi 0, %s16
    %s19 = sphi 0, %s17
    %s20 = sphi 0, %s18
    %s21 = sphi 0, %s19
    %s33 = sphi 0, %s35
    %s36 = sphi 0, %s33
    %s37 = sphi 0, %s36
    %s53 = sphi 0, %s37
    %s57 = sphi 0, %s57
    %s59 = sphi 0, %s57
    %s60 = sphi 0, %s59
    %s74 = sphi 0, %s60
    %s78 = sphi 0, %s78
    %s80 = sphi 0, %s78
    %s81 = sphi 0, %s80
    %s95 = sphi 0, %s81
    %s103 = sphi 0, %s105
    %s106 = sphi 0, %s103
    %s107 = sphi 0, %s106
    %s123 = sphi 0, %s107
  $region4: #{single_conv_block.3} parent=0 // loop_header_branch
    %12 = sbr.rel (%p10) target = $region8
  $region5: #{single_conv_block.3} parent=0 // loop_body
    %s14 = ssub.s32 %s9, 1
    %s15 = ssub.s32 %s9, 2
    %s22 = sadd.s32 1, %s17
    %p23 = scmp.ge.s32.totalorder %s22, 1
    %s24 = scalar_select %p23, 0, %s22
    %s25 = sadd.s32 1, %s16
    %s26 = scalar_select %p23, %s25, %s16
    %p27 = scmp.ge.s32.totalorder %s26, 2
    %s28 = scalar_select %p27, 0, %s26
    %s29 = ssub.s32 %s16, %s28
    %s30 = ssub.s32 %s17, %s24
    %s31 = sor.u32 %s29, %s30
    %p32 = scmp.eq.s32.totalorder %s31, 0
    %s34 = sadd.s32 %s33, 1
    %s35 = scalar_select %p32, %s33, %s34
    %p38 = pneg %p32
    %p39 = scmp.eq.s32.totalorder %s9, 1
    %p40 = por %p38, %p39
    %p41 = scmp.ne.s32.totalorder %s33, %s36
    %p42 = scmp.eq.s32.totalorder %s9, 0
    %p43 = por %p41, %p42
    %p44 = scmp.ne.s32.totalorder %s33, %s36
    %p45 = scmp.eq.s32.totalorder %s14, 1
    %p46 = por %p44, %p45
    %p47 = scmp.ne.s32.totalorder %s36, %s37
    %p48 = scmp.eq.s32.totalorder %s14, 0
    %p49 = por %p47, %p48
    %p50 = scmp.ne.s32.totalorder %s36, %s37
    %p51 = scmp.eq.s32.totalorder %s15, 1
    %p52 = por %p50, %p51
    %p54 = scmp.ne.s32.totalorder %s37, %s53
    %p55 = scmp.eq.s32.totalorder %s15, 0
    %p56 = por %p54, %p55
    %s58 = sadd.s32 %s57, 1
    %p61 = scmp.eq.s32.totalorder %s9, 1
    %p62 = scmp.ne.s32.totalorder %s57, %s59
    %p63 = scmp.eq.s32.totalorder %s9, 0
    %p64 = por %p62, %p63
    %p65 = scmp.ne.s32.totalorder %s57, %s59
    %p66 = scmp.eq.s32.totalorder %s14, 1
    %p67 = por %p65, %p66
    %p68 = scmp.ne.s32.totalorder %s59, %s60
    %p69 = scmp.eq.s32.totalorder %s14, 0
    %p70 = por %p68, %p69
    %p71 = scmp.ne.s32.totalorder %s59, %s60
    %p72 = scmp.eq.s32.totalorder %s15, 1
    %p73 = por %p71, %p72
    %p75 = scmp.ne.s32.totalorder %s60, %s74
    %p76 = scmp.eq.s32.totalorder %s15, 0
    %p77 = por %p75, %p76
    %s79 = sadd.s32 %s78, 1
    %p82 = scmp.eq.s32.totalorder %s9, 1
    %p83 = scmp.ne.s32.totalorder %s78, %s80
    %p84 = scmp.eq.s32.totalorder %s9, 0
    %p85 = por %p83, %p84
    %p86 = scmp.ne.s32.totalorder %s78, %s80
    %p87 = scmp.eq.s32.totalorder %s14, 1
    %p88 = por %p86, %p87
    %p89 = scmp.ne.s32.totalorder %s80, %s81
    %p90 = scmp.eq.s32.totalorder %s14, 0
    %p91 = por %p89, %p90
    %p92 = scmp.ne.s32.totalorder %s80, %s81
    %p93 = scmp.eq.s32.totalorder %s15, 1
    %p94 = por %p92, %p93
    %p96 = scmp.ne.s32.totalorder %s81, %s95
    %p97 = scmp.eq.s32.totalorder %s15, 0
    %p98 = por %p96, %p97
    %s99 = ssub.s32 %s16, %s28
    %s100 = ssub.s32 %s17, %s24
    %s101 = sor.u32 %s99, %s100
    %p102 = scmp.eq.s32.totalorder %s101, 0
    %s104 = sadd.s32 %s103, 1
    %s105 = scalar_select %p102, %s103, %s104
    %p108 = pneg %p102
    %p109 = scmp.eq.s32.totalorder %s9, 1
    %p110 = por %p108, %p109
    %p111 = scmp.ne.s32.totalorder %s103, %s106
    %p112 = scmp.eq.s32.totalorder %s9, 0
    %p113 = por %p111, %p112
    %p114 = scmp.ne.s32.totalorder %s103, %s106
    %p115 = scmp.eq.s32.totalorder %s14, 1
    %p116 = por %p114, %p115
    %p117 = scmp.ne.s32.totalorder %s106, %s107
    %p118 = scmp.eq.s32.totalorder %s14, 0
    %p119 = por %p117, %p118
    %p120 = scmp.ne.s32.totalorder %s106, %s107
    %p121 = scmp.eq.s32.totalorder %s15, 1
    %p122 = por %p120, %p121
    %p124 = scmp.ne.s32.totalorder %s107, %s123
    %p125 = scmp.eq.s32.totalorder %s15, 0
    %p126 = por %p124, %p125
    %p127 = scmp.le.s32.totalorder 1, %s9
    %p128 = scmp.lt.s32.totalorder %s9, 3
    %p129 = pnand %p127, %p128
    %p130 = pneg %p129
    // Predicated region
    $region9: #{single_conv_block.3} parent=5 // pred_check
      _
    $region10: #{single_conv_block.3} parent=5 // pred_check_branch
      %132 = sbr.rel (%p129) target = $region12
    $region11: #{single_conv_block.3} parent=5 // pred_region
      %s133 = ssub.s32 %s9, 1
      // Predicated region
      $region13: #{single_conv_block.3} parent=11 // pred_check
        %p134 = pneg %p70
      $region14: #{single_conv_block.3} parent=11 // pred_check_branch
        %136 = sbr.rel (%p134) target = $region16
      $region15: #{single_conv_block.3} parent=11 // pred_region
        _
      $region16: #{single_conv_block.3} parent=11 // pred_fallthru
        _
      // Predicated region
      $region17: #{single_conv_block.3} parent=11 // pred_check
        %p137 = pneg %p91
      $region18: #{single_conv_block.3} parent=11 // pred_check_branch
        %139 = sbr.rel (%p137) target = $region20
      $region19: #{single_conv_block.3} parent=11 // pred_region
        _
      $region20: #{single_conv_block.3} parent=11 // pred_fallthru
        _
    $region12: #{single_conv_block.3} parent=5 // pred_fallthru
      _
    %p140 = scmp.lt.s32.totalorder %s9, 2
    // Predicated region
    $region21: #{single_conv_block.3} parent=5 // pred_check
      %p141 = pneg %p140
    $region22: #{single_conv_block.3} parent=5 // pred_check_branch
      %143 = sbr.rel (%p141) target = $region24
    $region23: #{single_conv_block.3} parent=5 // pred_region
      // Predicated region
      $region25: #{single_conv_block.3} parent=23 // pred_check
        %p144 = pneg %p43
      $region26: #{single_conv_block.3} parent=23 // pred_check_branch
        %146 = sbr.rel (%p144) target = $region28
      $region27: #{single_conv_block.3} parent=23 // pred_region
        %p147 = scmp.lt.s32.totalorder %s16, 1
        %s148 = scalar_select %p147, %s16, 1
        %p149 = scmp.lt.s32.totalorder %s17, 0
        %s150 = scalar_select %p149, %s17, 0
        %s151 = sadd.s32 %s150, %s148
        %s152 = smul.addr %s151, 4
        %s153 = scalar_lea.vmem %s0, %s152
      $region28: #{single_conv_block.3} parent=23 // pred_fallthru
        _
    $region24: #{single_conv_block.3} parent=5 // pred_fallthru
      _
    %p154 = scmp.le.s32.totalorder 1, %s9
    %p155 = scmp.lt.s32.totalorder %s9, 3
    %p156 = pnand %p154, %p155
    %p157 = pneg %p156
    // Predicated region
    $region29: #{single_conv_block.3} parent=5 // pred_check
      _
    $region30: #{single_conv_block.3} parent=5 // pred_check_branch
      %159 = sbr.rel (%p156) target = $region32
    $region31: #{single_conv_block.3} parent=5 // pred_region
      %s160 = ssub.s32 %s9, 1
      %p161 = scmp.lt.s32.totalorder %s18, 1
      %s162 = scalar_select %p161, %s18, 1
      %p163 = scmp.lt.s32.totalorder %s19, 0
      %s164 = scalar_select %p163, %s19, 0
      %s165 = sadd.s32 %s164, %s162
      %s166 = smul.addr %s165, 4
      %s167 = scalar_lea.vmem %s0, %s166
      %p168 = pneg %p49
      %p169 = pneg %p46
      %p170 = pneg %p70
      %p171 = pneg %p67
      %p172 = pneg %p91
      %p173 = pneg %p88
      %p174 = pneg %p119
      %p175 = pneg %p116
      %p176 = scmp.lt.s32.totalorder %s18, 1
      %s177 = scalar_select %p176, %s18, 1
      %p178 = scmp.lt.s32.totalorder %s19, 0
      %s179 = scalar_select %p178, %s19, 0
      %s180 = sadd.s32 %s179, %s177
      %s181 = smul.addr %s180, 8
      %s182 = scalar_lea.vmem %s3, %s181
      %p183 = scmp.lt.s32.totalorder %s18, 1
      %s184 = scalar_select %p183, %s18, 1
      %p185 = scmp.lt.s32.totalorder %s19, 0
      %s186 = scalar_select %p185, %s19, 0
      %s187 = sadd.s32 %s186, %s184
      %s188 = smul.addr %s187, 4
      %s189 = scalar_lea.vmem %s0, %s188
      %p190 = scmp.lt.s32.totalorder %s18, 1
      %s191 = scalar_select %p190, %s18, 1
      %p192 = scmp.lt.s32.totalorder %s19, 0
      %s193 = scalar_select %p192, %s19, 0
      %s194 = sadd.s32 %s193, %s191
      %s195 = smul.addr %s194, 8
      %s196 = scalar_lea.vmem %s3, %s195
      %v197 = vld [vmem:[%s189] sm:$0xf]
      %v198 = vld [vmem:[%s1] sm:$0xff]
      %v199 = vld [vmem:[%s2] sm:$0xff]
      %201 = vset.pattern.permute.xlu0 0
      %202 = vperm.xlu0 %201, %v198
      %v203 = vpop.permute.xlu0 %202
      %v205 = vperm.slane %v197, 0
      %v206 = vmul.f32 %v203, %v205
      %208 = vset.pattern.permute.xlu0 0
      %209 = vperm.xlu0 %208, %v199
      %v210 = vpop.permute.xlu0 %209
      %v212 = vadd.f32 %v210, %v206
      %213 = vset.pattern.permute.xlu0 1
      %214 = vperm.xlu0 %213, %v198
      %v215 = vpop.permute.xlu0 %214
      %v217 = vperm.slane %v197, 1
      %v218 = vmul.f32 %v215, %v217
      %v219 = vadd.f32 %v212, %v218
      %220 = vset.pattern.permute.xlu0 2
      %221 = vperm.xlu0 %220, %v198
      %v222 = vpop.permute.xlu0 %221
      %v224 = vperm.slane %v197, 2
      %v225 = vmul.f32 %v222, %v224
      %v226 = vadd.f32 %v219, %v225
      %227 = vset.pattern.permute.xlu0 3
      %228 = vperm.xlu0 %227, %v198
      %v229 = vpop.permute.xlu0 %228
      %v231 = vperm.slane %v197, 3
      %v232 = vmul.f32 %v229, %v231
      %v233 = vadd.f32 %v226, %v232
      %vm234 = vcmask 523264
      %235 = vst.msk [vmem:[%s196] sm:$0xff] %vm234, %v233
      %p236 = scmp.lt.s32.totalorder %s18, 1
      %s237 = scalar_select %p236, %s18, 1
      %p238 = scmp.lt.s32.totalorder %s19, 0
      %s239 = scalar_select %p238, %s19, 0
      %s240 = sadd.s32 %s239, %s237
      %s241 = smul.addr %s240, 8
      %s242 = scalar_lea.vmem %s3, %s241
      // Predicated region
      $region33: #{single_conv_block.3} parent=31 // pred_check
        %p243 = pneg %p116
      $region34: #{single_conv_block.3} parent=31 // pred_check_branch
        %245 = sbr.rel (%p243) target = $region36
      $region35: #{single_conv_block.3} parent=31 // pred_region
        _
      $region36: #{single_conv_block.3} parent=31 // pred_fallthru
        _
    $region32: #{single_conv_block.3} parent=5 // pred_fallthru
      _
    %p246 = scmp.le.s32.totalorder 2, %s9
    // Predicated region
    $region37: #{single_conv_block.3} parent=5 // pred_check
      %p247 = pneg %p246
    $region38: #{single_conv_block.3} parent=5 // pred_check_branch
      %249 = sbr.rel (%p247) target = $region40
    $region39: #{single_conv_block.3} parent=5 // pred_region
      %s250 = ssub.s32 %s9, 2
      // Predicated region
      $region41: #{single_conv_block.3} parent=39 // pred_check
        %p251 = pneg %p122
      $region42: #{single_conv_block.3} parent=39 // pred_check_branch
        %253 = sbr.rel (%p251) target = $region44
      $region43: #{single_conv_block.3} parent=39 // pred_region
        %p254 = scmp.lt.s32.totalorder %s20, 1
        %s255 = scalar_select %p254, %s20, 1
        %p256 = scmp.lt.s32.totalorder %s21, 0
        %s257 = scalar_select %p256, %s21, 0
        %s258 = sadd.s32 %s257, %s255
        %s259 = smul.addr %s258, 8
        %s260 = scalar_lea.vmem %s3, %s259
      $region44: #{single_conv_block.3} parent=39 // pred_fallthru
        _
    $region40: #{single_conv_block.3} parent=5 // pred_fallthru
      _
  $region6: #{single_conv_block.3} parent=0 // loop_footer
    %s13 = sadd.s32 1, %s9
  $region7: #{single_conv_block.3} parent=0 // loop_footer_branch
    %8 = sbr.rel target = $region3
  $region8: #{single_conv_block.3} parent=0 // loop_exit
    _

</llo_original>
